<compile_context>
chip_gen: v6e
topology: v6e:2x2x1
jax: 0.10.0
libtpu: 0.0.40
codegen_flags: <defaults>
</compile_context>

<pallas_src>
import functools

import jax
import jax.numpy as jnp
from jax.experimental import pallas as pl
from jax.experimental.pallas import tpu as pltpu


def _round_up(x, m):
    return ((x + m - 1) // m) * m


def transr_kernel(hd_ref, et_ref, gt_ref, w_ref, out_ref):
    # hd_ref : [TILE_E, D] f32   (h[row] - h[col]) rows for this tile (streamed)
    # et_ref : [1, TILE_E] i32   edge types for this tile (streamed)
    # gt_ref : [D, R]      f32   relation embeddings, transposed (VMEM-resident)
    # w_ref  : [D, D]      f32   nn.Linear weight (out_features, in_features), resident
    # out_ref: [1, TILE_E] f32   L1 distances, lane-dense row
    r = gt_ref.shape[1]
    tile_e = et_ref.shape[1]

    # proj^T = W @ (h_row - h_col)^T == ((h_row - h_col) @ W^T)^T   -> [D, TILE_E]
    # Contracting dim 1 of both operands consumes W in its native layout (no transpose copy).
    proj_t = jax.lax.dot_general(
        w_ref[...], hd_ref[...],
        dimension_numbers=(((1,), (1,)), ((), ())),
        preferred_element_type=jnp.float32)

    # On-chip relation gather: one_hot[r, e] = (edge_type[e] == r);  g_e^T = g^T @ one_hot.
    onehot = (et_ref[...] ==
              jax.lax.broadcasted_iota(jnp.int32, (r, tile_e), 0)).astype(jnp.float32)
    ge_t = jnp.dot(gt_ref[...], onehot, preferred_element_type=jnp.float32)  # [D, TILE_E]

    # L1 norm over the feature (sublane) axis -> lane-dense (1, TILE_E) output row.
    out_ref[...] = jnp.sum(jnp.abs(proj_t + ge_t), axis=0, keepdims=True)


@functools.partial(jax.jit, static_argnames=("tile_e",))
def transr_forward(h, g, edge_idx, edge_type, weight, bias=None, *, tile_e=512):
    """h: [N, D] node embeddings, g: [R, D] relation embeddings,
    edge_idx: [2, E] int32, edge_type: [E] int32, weight: [D, D] nn.Linear weight.
    `bias` is accepted for API parity but the TransR distance is independent of it
    (it cancels exactly in s - t)."""
    del bias
    row, col = edge_idx[0], edge_idx[1]
    # Head/tail gather fused into a single [E, D] difference: one streamed operand
    # instead of two (and no separate s / t projections).
    # TODO(synk): for very large E a fully in-kernel row gather of `h` (manual DMA gather
    # driven by scalar-prefetched indices) would remove this XLA gather as well.
    hd = h[row, :] - h[col, :]
    E, D = hd.shape
    R = g.shape[0]

    # Edge tiling: multiples of 128 keep the lane-dense output blocks layout-legal.
    tile_e = min(tile_e, _round_up(E, 128))
    e_pad = _round_up(E, tile_e)
    if e_pad != E:
        hd = jnp.pad(hd, ((0, e_pad - E), (0, 0)))
        edge_type = jnp.pad(edge_type, (0, e_pad - E))
    et_row = edge_type.astype(jnp.int32).reshape(1, e_pad)
    g_t = g.T  # [D, R] tiny one-time transpose so the in-kernel gather is a plain matmul

    num_tiles = e_pad // tile_e
    out = pl.pallas_call(
        transr_kernel,
        out_shape=jax.ShapeDtypeStruct((1, e_pad), jnp.float32),
        grid=(num_tiles,),
        in_specs=[
            pl.BlockSpec((tile_e, D), lambda i: (i, 0)),  # hd: streamed, double-buffered
            pl.BlockSpec((1, tile_e), lambda i: (0, i)),  # edge types: streamed
            pl.BlockSpec((D, R), lambda i: (0, 0)),       # g^T: resident across steps
            pl.BlockSpec((D, D), lambda i: (0, 0)),       # W:   resident across steps
        ],
        out_specs=pl.BlockSpec((1, tile_e), lambda i: (0, i)),
        compiler_params=pltpu.CompilerParams(
            dimension_semantics=("parallel",),        # shard edge tiles across TCs (v7x)
            vmem_limit_bytes=48 * 1024 * 1024,        # headroom under v7x's 64 MiB VMEM
        ),
    )(hd, et_row, g_t, weight)
    return out[0, :E]


if __name__ == "__main__":
    key = jax.random.PRNGKey(0)
    k1, k2, k3, k4, k5, k6 = jax.random.split(key, 6)

    N = 16          # number of nodes
    D = 32          # embedding_size
    R = 4           # number of relation types
    E = 8           # number of edges

    # Deterministic synthetic parameters (shapes match nn.Linear(D, D, bias=True)).
    weight = jax.random.normal(k1, (D, D), dtype=jnp.float32) * 0.1
    bias = jax.random.normal(k2, (D,), dtype=jnp.float32) * 0.1

    # Inputs.
    h = jax.random.normal(k3, (N, D), dtype=jnp.float32)
    g = jax.random.normal(k4, (R, D), dtype=jnp.float32)
    edge_idx = jax.random.randint(k5, (2, E), 0, N, dtype=jnp.int32)
    edge_type = jax.random.randint(k6, (E,), 0, R, dtype=jnp.int32)

    d_norm = transr_forward(h, g, edge_idx, edge_type, weight, bias)
    d_norm = jax.block_until_ready(d_norm)

    # Pure-JAX reference using the original (two projections + bias) formulation.
    s_ref = h[edge_idx[0]] @ weight.T + bias
    t_ref = h[edge_idx[1]] @ weight.T + bias
    ref = jnp.sum(jnp.abs(s_ref + g[edge_type] - t_ref), axis=1)

    assert d_norm.shape == (E,)
    assert jnp.allclose(d_norm, ref, atol=1e-3, rtol=1e-3), (
        f"max abs err {jnp.max(jnp.abs(d_norm - ref))}")

    print("KERNEL_OK")
</pallas_src>

<mosaic_0001>
module attributes {stable_mosaic.version = 11 : i64} {
  func.func @transr_kernel(%arg0: i32, %arg1: memref<128x32xf32, #tpu.memory_space<vmem>>, %arg2: memref<1x128xi32, #tpu.memory_space<vmem>>, %arg3: memref<32x4xf32, #tpu.memory_space<vmem>>, %arg4: memref<32x32xf32, #tpu.memory_space<vmem>>, %arg5: memref<1x128xf32, #tpu.memory_space<vmem>>) attributes {dimension_semantics = [#tpu.dimension_semantics<parallel>], iteration_bounds = array<i64: 1>, scalar_prefetch = 0 : i64, scratch_operands = 0 : i64, tpu.core_type = #tpu.core_type<tc>, window_params = [{transform_indices = @transform_0, window_bounds = array<i64: 128, 32>}, {transform_indices = @transform_1, window_bounds = array<i64: 1, 128>}, {pipeline_mode = #tpu.pipeline_mode<synchronous>, transform_indices = @transform_2, window_bounds = array<i64: 32, 4>}, {pipeline_mode = #tpu.pipeline_mode<synchronous>, transform_indices = @transform_3, window_bounds = array<i64: 32, 32>}, {transform_indices = @transform_4, window_bounds = array<i64: 1, 128>}]} {
    %c0 = arith.constant 0 : index
    %c0_0 = arith.constant 0 : index
    %0 = vector.load %arg4[%c0, %c0_0] : memref<32x32xf32, #tpu.memory_space<vmem>>, vector<32x32xf32>
    %c0_1 = arith.constant 0 : index
    %c0_2 = arith.constant 0 : index
    %1 = vector.load %arg1[%c0_1, %c0_2] : memref<128x32xf32, #tpu.memory_space<vmem>>, vector<128x32xf32>
    %cst = arith.constant dense<0.000000e+00> : vector<32x128xf32>
    %2 = tpu.matmul %0, %1, %cst {dimension_numbers = #tpu.dot_dimension_numbers<[1], [1], [0], [0], [0, 0, 1, 0], [], []>} : vector<32x32xf32>, vector<128x32xf32>, vector<32x128xf32> -> vector<32x128xf32>
    %c0_3 = arith.constant 0 : index
    %c0_4 = arith.constant 0 : index
    %3 = vector.load %arg2[%c0_3, %c0_4] : memref<1x128xi32, #tpu.memory_space<vmem>>, vector<1x128xi32>
    %4 = tpu.iota {dimensions = array<i32: 0>} : vector<4x128xi32>
    %5 = vector.broadcast %3 : vector<1x128xi32> to vector<4x128xi32>
    %6 = arith.cmpi eq, %5, %4 : vector<4x128xi32>
    %7 = arith.extui %6 : vector<4x128xi1> to vector<4x128xi32>
    %8 = arith.sitofp %7 : vector<4x128xi32> to vector<4x128xf32>
    %c0_5 = arith.constant 0 : index
    %c0_6 = arith.constant 0 : index
    %9 = vector.load %arg3[%c0_5, %c0_6] : memref<32x4xf32, #tpu.memory_space<vmem>>, vector<32x4xf32>
    %cst_7 = arith.constant dense<0.000000e+00> : vector<32x128xf32>
    %10 = tpu.matmul %9, %8, %cst_7 {dimension_numbers = #tpu.dot_dimension_numbers<[1], [0], [0], [1], [0, 0, 1, 1], [], []>} : vector<32x4xf32>, vector<4x128xf32>, vector<32x128xf32> -> vector<32x128xf32>
    %11 = arith.addf %2, %10 : vector<32x128xf32>
    %12 = math.absf %11 : vector<32x128xf32>
    %cst_8 = arith.constant dense<0.000000e+00> : vector<128xf32>
    %13 = vector.multi_reduction <add>, %12, %cst_8 [0] : vector<32x128xf32> to vector<128xf32>
    %14 = vector.shape_cast %13 : vector<128xf32> to vector<1x128xf32>
    %c0_9 = arith.constant 0 : index
    %c0_10 = arith.constant 0 : index
    %15 = vector.load %arg5[%c0_9, %c0_10] : memref<1x128xf32, #tpu.memory_space<vmem>>, vector<1x128xf32>
    tpu.vector_store %arg5[%c0_9, %c0_10], %14 {strides = array<i32>} : memref<1x128xf32, #tpu.memory_space<vmem>>, vector<1x128xf32>,
    return
  }
  func.func @transform_0(%arg0: i32) -> (i32, i32) {
    %c0_i32 = arith.constant 0 : i32
    %c0_i32_0 = arith.constant 0 : i32
    return %arg0, %c0_i32 : i32, i32
  }
  func.func @transform_1(%arg0: i32) -> (i32, i32) {
    %c0_i32 = arith.constant 0 : i32
    %c0_i32_0 = arith.constant 0 : i32
    return %c0_i32, %arg0 : i32, i32
  }
  func.func @transform_2(%arg0: i32) -> (i32, i32) {
    %c0_i32 = arith.constant 0 : i32
    %c0_i32_0 = arith.constant 0 : i32
    %c0_i32_1 = arith.constant 0 : i32
    return %c0_i32, %c0_i32_0 : i32, i32
  }
  func.func @transform_3(%arg0: i32) -> (i32, i32) {
    %c0_i32 = arith.constant 0 : i32
    %c0_i32_0 = arith.constant 0 : i32
    %c0_i32_1 = arith.constant 0 : i32
    return %c0_i32, %c0_i32_0 : i32, i32
  }
  func.func @transform_4(%arg0: i32) -> (i32, i32) {
    %c0_i32 = arith.constant 0 : i32
    %c0_i32_0 = arith.constant 0 : i32
    return %c0_i32, %arg0 : i32, i32
  }
}

</mosaic_0001>

<llo_original>
// kernel: sub.1
$region0: #{sub.1}
  #allocation0 [shape = 's32[1]{0}', space=sflag, size = 0x4, scoped, tag = 'scoped memory for sub.1']
  %s0 = inlined_call_operand.vmem [shape: f32[8,32], index: 0, kind: input, shape index: {}]
  %s1 = inlined_call_operand.vmem [shape: f32[8,32], index: 1, kind: input, shape index: {}]
  %s2 = inlined_call_operand.vmem [shape: f32[8,32], index: 2, kind: output, shape index: {}]
  %v3 = vld [vmem:[%s0] sm:$0xff]
  %v4 = vld [vmem:[%s1] sm:$0xff]
  %5 = xla_tuple %v3, %v4
  %6 = xla_tuple %5
  %v7 = vsub.f32 %v3, %v4
  %8 = xla_tuple %v7
  %9 = vst [vmem:[%s2] sm:$0xff] %v7

// kernel: transr_forward.1
$region0: #{transr_forward.1}
  #allocation0 [shape = 'u32[]', space=smem, size = 0x4, offset = 0x4, fixed_abs, tag = 'smem constant byte address 0x4 - core index']
  #allocation1 [shape = 'u32[144,128]{1,0:T(1,128)}', space=vmem, size = 0x12000, scoped, tag = 'internal scratch']
  %s0 = inlined_call_operand.vmem [shape: f32[128,32], index: 0, kind: input, shape index: {}]
  %s1 = inlined_call_operand.vmem [shape: s32[1,128], index: 1, kind: input, shape index: {}]
  %s2 = inlined_call_operand.vmem [shape: f32[32,4], index: 2, kind: input, shape index: {}]
  %s3 = inlined_call_operand.vmem [shape: f32[32,32], index: 3, kind: input, shape index: {}]
  %s4 = inlined_call_operand.vmem [shape: f32[1,128], index: 4, kind: output, shape index: {}]
  %s5 = sld [smem:[#allocation0]]
  $region26: #{transr_forward.1} parent=0
    _
  %s7 = ssub.s32 1, %s5
  %s8 = scalar_select 0, %s7, %s5
  // Predicated region
  $region2: #{transr_forward.1} parent=0 // pred_check
    _
  $region3: #{transr_forward.1} parent=0 // pred_check_branch
    %10 = sbr.rel (0) target = $region5
  $region4: #{transr_forward.1} parent=0 // pred_region
    _
  $region5: #{transr_forward.1} parent=0 // pred_fallthru
    _
  // Predicated region
  $region6: #{transr_forward.1} parent=0 // pred_check
    _
  $region7: #{transr_forward.1} parent=0 // pred_check_branch
    %12 = sbr.rel (0) target = $region9
  $region8: #{transr_forward.1} parent=0 // pred_region
    _
  $region9: #{transr_forward.1} parent=0 // pred_fallthru
    _
  // Predicated region
  $region10: #{transr_forward.1} parent=0 // pred_check
    _
  $region11: #{transr_forward.1} parent=0 // pred_check_branch
    %14 = sbr.rel (0) target = $region13
  $region12: #{transr_forward.1} parent=0 // pred_region
    _
  $region13: #{transr_forward.1} parent=0 // pred_fallthru
    _
  // Predicated region
  $region14: #{transr_forward.1} parent=0 // pred_check
    _
  $region15: #{transr_forward.1} parent=0 // pred_check_branch
    %16 = sbr.rel (0) target = $region17
  $region16: #{transr_forward.1} parent=0 // pred_region
    _
  $region17: #{transr_forward.1} parent=0 // pred_fallthru
    _
  %v17 = vld [vmem:[%s3] sm:$0xff]
  %v18 = vld [vmem:[%s3 + $0x8] sm:$0xff]
  %v19 = vld [vmem:[%s3 + $0x10] sm:$0xff]
  %v20 = vld [vmem:[%s3 + $0x18] sm:$0xff]
  %v21 = vld [vmem:[%s0] sm:$0xff]
  %v22 = vld [vmem:[%s0 + $0x8] sm:$0xff]
  %v23 = vld [vmem:[%s0 + $0x10] sm:$0xff]
  %v24 = vld [vmem:[%s0 + $0x18] sm:$0xff]
  %v25 = vld [vmem:[%s0 + $0x20] sm:$0xff]
  %v26 = vld [vmem:[%s0 + $0x28] sm:$0xff]
  %v27 = vld [vmem:[%s0 + $0x30] sm:$0xff]
  %v28 = vld [vmem:[%s0 + $0x38] sm:$0xff]
  %v29 = vld [vmem:[%s0 + $0x40] sm:$0xff]
  %v30 = vld [vmem:[%s0 + $0x48] sm:$0xff]
  %v31 = vld [vmem:[%s0 + $0x50] sm:$0xff]
  %v32 = vld [vmem:[%s0 + $0x58] sm:$0xff]
  %v33 = vld [vmem:[%s0 + $0x60] sm:$0xff]
  %v34 = vld [vmem:[%s0 + $0x68] sm:$0xff]
  %v35 = vld [vmem:[%s0 + $0x70] sm:$0xff]
  %v36 = vld [vmem:[%s0 + $0x78] sm:$0xff]
  %v37 = vld [vmem:[%s1] sm:$0x1]
  %v38 = vlaneseq
  %v39 = vshrl.u32 %v38, 7
  %v40 = vlaneseq
  %v41 = vshrl.u32 %v40, 7
  %v42 = vsub.s32 0, %v41
  %v43 = vrot.slane %v37, %v42
  %vm44 = vcmp.eq.s32.totalorder %v43, %v39
  %v45 = vsel %vm44, 1, 0
  %v46 = vcvt.s32.f32 %v45
  %v47 = vld [vmem:[%s2] sm:$0xff]
  %v48 = vld [vmem:[%s2 + $0x8] sm:$0xff]
  %v49 = vld [vmem:[%s2 + $0x10] sm:$0xff]
  %v50 = vld [vmem:[%s2 + $0x18] sm:$0xff]
  %vm51 = vcmask 31744
  %v53 = vsel %vm51, %v47, 0
  %v56 = vsel %vm51, %v48, 0
  %v59 = vsel %vm51, %v49, 0
  %v62 = vsel %vm51, %v50, 0
  %vm64 = vcmask 1043456
  %v66 = vsel %vm64, %v46, 0
  %68 = vmatprep.subr.mxu0 0.0
  %69 = vmatpush1.msra.mxu0 0.0
  %70 = vmatprep.subr.mxu0 0.0
  %71 = vmatpush1.msra.mxu0 0.0
  %72 = vmatprep.subr.mxu0 0.0
  %73 = vmatpush1.msra.mxu0 0.0
  %74 = vmatprep.subr.mxu0 0.0
  %75 = vmatpush1.msra.mxu0 0.0
  %76 = vmatprep.subr.mxu0 0.0
  %77 = vmatpush1.msra.mxu0 0.0
  %78 = vmatprep.subr.mxu0 0.0
  %79 = vmatpush1.msra.mxu0 0.0
  %80 = vmatprep.subr.mxu0 0.0
  %81 = vmatpush1.msra.mxu0 0.0
  %82 = vmatprep.subr.mxu0 0.0
  %83 = vmatpush1.msra.mxu0 0.0
  %84 = vmatprep.subr.mxu0 0.0
  %85 = vmatpush1.msra.mxu0 0.0
  %86 = vmatprep.subr.mxu0 0.0
  %87 = vmatpush1.msra.mxu0 0.0
  %88 = vmatprep.subr.mxu0 0.0
  %89 = vmatpush1.msra.mxu0 0.0
  %90 = vmatprep.subr.mxu0 0.0
  %91 = vmatpush1.msra.mxu0 0.0
  %92 = vmatprep.subr.mxu0 0.0
  %93 = vmatpush1.msra.mxu0 0.0
  %94 = vmatprep.subr.mxu0 0.0
  %95 = vmatpush1.msra.mxu0 0.0
  %96 = vmatprep.subr.mxu0 0.0
  %97 = vmatpush1.msra.mxu0 0.0
  %98 = vmatprep.subr.mxu0 0.0
  %99 = vmatpush1.msra.mxu0 %v66
  %100 = vmatprep.subr.mxu0 0.0
  %101 = vmatpush2.msra.mxu0 0.0
  %102 = vmatprep.subr.mxu0 0.0
  %103 = vmatpush2.msra.mxu0 0.0
  %104 = vmatprep.subr.mxu0 0.0
  %105 = vmatpush2.msra.mxu0 0.0
  %106 = vmatprep.subr.mxu0 0.0
  %107 = vmatpush2.msra.mxu0 0.0
  %108 = vmatprep.subr.mxu0 0.0
  %109 = vmatpush2.msra.mxu0 0.0
  %110 = vmatprep.subr.mxu0 0.0
  %111 = vmatpush2.msra.mxu0 0.0
  %112 = vmatprep.subr.mxu0 0.0
  %113 = vmatpush2.msra.mxu0 0.0
  %114 = vmatprep.subr.mxu0 0.0
  %115 = vmatpush2.msra.mxu0 0.0
  %116 = vmatprep.subr.mxu0 0.0
  %117 = vmatpush2.msra.mxu0 0.0
  %118 = vmatprep.subr.mxu0 0.0
  %119 = vmatpush2.msra.mxu0 0.0
  %120 = vmatprep.subr.mxu0 0.0
  %121 = vmatpush2.msra.mxu0 0.0
  %122 = vmatprep.subr.mxu0 0.0
  %123 = vmatpush2.msra.mxu0 0.0
  %124 = vmatprep.subr.mxu0 0.0
  %125 = vmatpush2.msra.mxu0 0.0
  %126 = vmatprep.subr.mxu0 0.0
  %127 = vmatpush2.msra.mxu0 0.0
  %128 = vmatprep.subr.mxu0 0.0
  %129 = vmatpush2.msra.mxu0 0.0
  %130 = vmatprep.subr.mxu0 0.0
  %131 = vmatpush2.msra.mxu0 0.0
  %132 = vmatprep.mubr.f32.mxu0 0.0
  %133 = vmatmul.mubr.f32.gmra.mxu0 %v53
  %v134 = vpop.f32.mrf.mxu0
  %v135 = vadd.f32 0.0, %v134
  %v136 = vpop.f32.mrf.mxu0
  %137 = vmatprep.mubr.f32.mxu0 0.0
  %138 = vmatmul.mubr.f32.gmra.mxu0 %v56
  %v139 = vpop.f32.mrf.mxu0
  %v140 = vadd.f32 0.0, %v139
  %v141 = vpop.f32.mrf.mxu0
  %142 = vmatprep.mubr.f32.mxu0 0.0
  %143 = vmatmul.mubr.f32.gmra.mxu0 %v59
  %v144 = vpop.f32.mrf.mxu0
  %v145 = vadd.f32 0.0, %v144
  %v146 = vpop.f32.mrf.mxu0
  %147 = vmatprep.mubr.f32.mxu0 0.0
  %148 = vmatmul.mubr.f32.gmra.mxu0 %v62
  %v149 = vpop.f32.mrf.mxu0
  %v150 = vadd.f32 0.0, %v149
  %v151 = vpop.f32.mrf.mxu0
  %152 = vdwg.mxu0
  %vm153 = vcmask 261120
  %v155 = vsel %vm153, %v17, 0
  %v158 = vsel %vm153, %v18, 0
  %v161 = vsel %vm153, %v19, 0
  %v164 = vsel %vm153, %v20, 0
  %v167 = vsel %vm153, %v21, 0
  %v170 = vsel %vm153, %v22, 0
  %v173 = vsel %vm153, %v23, 0
  %v176 = vsel %vm153, %v24, 0
  %v179 = vsel %vm153, %v25, 0
  %v182 = vsel %vm153, %v26, 0
  %v185 = vsel %vm153, %v27, 0
  %v188 = vsel %vm153, %v28, 0
  %v191 = vsel %vm153, %v29, 0
  %v194 = vsel %vm153, %v30, 0
  %v197 = vsel %vm153, %v31, 0
  %v200 = vsel %vm153, %v32, 0
  %v203 = vsel %vm153, %v33, 0
  %v206 = vsel %vm153, %v34, 0
  %v209 = vsel %vm153, %v35, 0
  %v212 = vsel %vm153, %v36, 0
  %214 = vmatprep.subr.mxu0 0.0
  %215 = vmatpush1.xpose.msra.mxu0 %v212
  %216 = vmatprep.subr.mxu0 0.0
  %217 = vmatpush1.xpose.msra.mxu0 %v209
  %218 = vmatprep.subr.mxu0 0.0
  %219 = vmatpush1.xpose.msra.mxu0 %v206
  %220 = vmatprep.subr.mxu0 0.0
  %221 = vmatpush1.xpose.msra.mxu0 %v203
  %222 = vmatprep.subr.mxu0 0.0
  %223 = vmatpush1.xpose.msra.mxu0 %v200
  %224 = vmatprep.subr.mxu0 0.0
  %225 = vmatpush1.xpose.msra.mxu0 %v197
  %226 = vmatprep.subr.mxu0 0.0
  %227 = vmatpush1.xpose.msra.mxu0 %v194
  %228 = vmatprep.subr.mxu0 0.0
  %229 = vmatpush1.xpose.msra.mxu0 %v191
  %230 = vmatprep.subr.mxu0 0.0
  %231 = vmatpush1.xpose.msra.mxu0 %v188
  %232 = vmatprep.subr.mxu0 0.0
  %233 = vmatpush1.xpose.msra.mxu0 %v185
  %234 = vmatprep.subr.mxu0 0.0
  %235 = vmatpush1.xpose.msra.mxu0 %v182
  %236 = vmatprep.subr.mxu0 0.0
  %237 = vmatpush1.xpose.msra.mxu0 %v179
  %238 = vmatprep.subr.mxu0 0.0
  %239 = vmatpush1.xpose.msra.mxu0 %v176
  %240 = vmatprep.subr.mxu0 0.0
  %241 = vmatpush1.xpose.msra.mxu0 %v173
  %242 = vmatprep.subr.mxu0 0.0
  %243 = vmatpush1.xpose.msra.mxu0 %v170
  %244 = vmatprep.subr.mxu0 0.0
  %245 = vmatpush1.xpose.msra.mxu0 %v167
  %246 = vmatprep.subr.mxu0 0.0
  %247 = vmatpush2.xpose.msra.mxu0 0.0
  %248 = vmatprep.subr.mxu0 0.0
  %249 = vmatpush2.xpose.msra.mxu0 0.0
  %250 = vmatprep.subr.mxu0 0.0
  %251 = vmatpush2.xpose.msra.mxu0 0.0
  %252 = vmatprep.subr.mxu0 0.0
  %253 = vmatpush2.xpose.msra.mxu0 0.0
  %254 = vmatprep.subr.mxu0 0.0
  %255 = vmatpush2.xpose.msra.mxu0 0.0
  %256 = vmatprep.subr.mxu0 0.0
  %257 = vmatpush2.xpose.msra.mxu0 0.0
  %258 = vmatprep.subr.mxu0 0.0
  %259 = vmatpush2.xpose.msra.mxu0 0.0
  %260 = vmatprep.subr.mxu0 0.0
  %261 = vmatpush2.xpose.msra.mxu0 0.0
  %262 = vmatprep.subr.mxu0 0.0
  %263 = vmatpush2.xpose.msra.mxu0 0.0
  %264 = vmatprep.subr.mxu0 0.0
  %265 = vmatpush2.xpose.msra.mxu0 0.0
  %266 = vmatprep.subr.mxu0 0.0
  %267 = vmatpush2.xpose.msra.mxu0 0.0
  %268 = vmatprep.subr.mxu0 0.0
  %269 = vmatpush2.xpose.msra.mxu0 0.0
  %270 = vmatprep.subr.mxu0 0.0
  %271 = vmatpush2.xpose.msra.mxu0 0.0
  %272 = vmatprep.subr.mxu0 0.0
  %273 = vmatpush2.xpose.msra.mxu0 0.0
  %274 = vmatprep.subr.mxu0 0.0
  %275 = vmatpush2.xpose.msra.mxu0 0.0
  %276 = vmatprep.subr.mxu0 0.0
  %277 = vmatpush2.xpose.msra.mxu0 0.0
  %278 = vmatprep.mubr.f32.mxu0 0.0
  %279 = vmatmul.mubr.f32.gmra.mxu0 %v155
  %v280 = vpop.f32.mrf.mxu0
  %v281 = vadd.f32 %v135, %v280
  %v282 = vpop.f32.mrf.mxu0
  %283 = vmatprep.mubr.f32.mxu0 0.0
  %284 = vmatmul.mubr.f32.gmra.mxu0 %v158
  %v285 = vpop.f32.mrf.mxu0
  %v286 = vadd.f32 %v140, %v285
  %v287 = vpop.f32.mrf.mxu0
  %288 = vmatprep.mubr.f32.mxu0 0.0
  %289 = vmatmul.mubr.f32.gmra.mxu0 %v161
  %v290 = vpop.f32.mrf.mxu0
  %v291 = vadd.f32 %v145, %v290
  %v292 = vpop.f32.mrf.mxu0
  %293 = vmatprep.mubr.f32.mxu0 0.0
  %294 = vmatmul.mubr.f32.gmra.mxu0 %v164
  %v295 = vpop.f32.mrf.mxu0
  %v296 = vadd.f32 %v150, %v295
  %v297 = vpop.f32.mrf.mxu0
  %298 = vdwg.mxu0
  %v299 = vand.u32 2147483647, %v281
  %v300 = vand.u32 2147483647, %v286
  %v301 = vand.u32 2147483647, %v291
  %v302 = vand.u32 2147483647, %v296
  %v303 = vadd.f32 %v299, %v300
  %v304 = vadd.f32 %v303, %v301
  %v305 = vadd.f32 %v304, %v302
  %v306 = vrot.slane %v305, 4
  %v307 = vadd.f32 %v305, %v306
  %v308 = vrot.slane %v307, 2
  %v309 = vadd.f32 %v307, %v308
  %v310 = vrot.slane %v309, 1
  %v311 = vadd.f32 %v309, %v310
  %312 = vst [vmem:[%s4] sm:$0x1] %v311
  // Predicated region
  $region18: #{transr_forward.1} parent=0 // pred_check
    _
  $region19: #{transr_forward.1} parent=0 // pred_check_branch
    %314 = sbr.rel (0) target = $region21
  $region20: #{transr_forward.1} parent=0 // pred_region
    _
  $region21: #{transr_forward.1} parent=0 // pred_fallthru
    _
  // Predicated region
  $region22: #{transr_forward.1} parent=0 // pred_check
    _
  $region23: #{transr_forward.1} parent=0 // pred_check_branch
    %316 = sbr.rel (0) target = $region25
  $region24: #{transr_forward.1} parent=0 // pred_region
    _
  $region25: #{transr_forward.1} parent=0 // pred_fallthru
    _

</llo_original>
